<compile_context>
chip_gen: v5e
topology: v5e:2x2
jax: 0.10.0
libtpu: 0.0.40
codegen_flags: <defaults>
</compile_context>

<pallas_src>
import math
import jax
import jax.numpy as jnp
from jax.experimental import pallas as pl
from jax.experimental.pallas import tpu as pltpu

# ---------------- model hyper-parameters (small, consistent with forward) ----
B, S, H = 2, 8, 32            # batch, seq_len, encoder hidden
NUM_HEADS, HEAD_DIM = 2, 16   # H = NUM_HEADS * HEAD_DIM
FFN = 64
VOCAB = 50
NUM_LABELS = 7
DIM_REDUCE = 2
HR = H // DIM_REDUCE          # reduced hidden (tag_dim_reduce output)
NUM_LANGS = 4

CONFIG = dict(model_type='bert', dim_reduce=DIM_REDUCE, dropout_rate=0.1,
              tag_un=True, lang_un=False, evi_un=False,
              tag_un_as_regression=False, dataset_name='synthetic')

# ---------------- packed weight slab layout (rows aligned to multiples of 8) --
VOCAB_PAD = 64                # word-embedding rows padded 50 -> 64
W_LANES = 128                 # slab lane width (also the padded output width)

WE0   = 0                     # word embedding        (VOCAB_PAD, H)
POS0  = WE0 + VOCAB_PAD       # pre-tiled positions   (B*S, H)
TYPE0 = POS0 + B * S          # token-type embedding  (2, H)  (8 rows reserved)
WQKV0 = TYPE0 + 8             # fused QKV weight      (H, 3H)
WO0   = WQKV0 + H             # attention out proj    (H, H)
W10   = WO0 + H               # FFN in                (H, FFN)
W20   = W10 + H               # FFN out               (FFN, H)
WC0   = W20 + FFN             # folded tag head       (H, 128) [cols 0:L+1 used]
VEC0  = WC0 + H               # bias / LN vector block (16, 128)
SLAB_ROWS = VEC0 + 16         # 296

# rows inside the vector block
V_LNE_G, V_LNE_B = 0, 1
V_LN1_G, V_LN1_B = 2, 3
V_LN2_G, V_LN2_B = 4, 5
V_BQKV, V_BO, V_B1, V_B2, V_BTU = 6, 7, 8, 9, 10


# ---------------------------- fused Pallas kernel -----------------------------
def fused_tag_kernel(ids_ref, addmask_ref, slab_ref, out_ref):
    """Whole forward pass in one invocation (no grid).

    ids_ref:     (B*S, 2) int32   [:,0]=input_ids  [:,1]=token_type_ids
    addmask_ref: (NUM_HEADS*B*S, B*S) f32 additive mask (batch-block + padding)
    slab_ref:    (SLAB_ROWS, 128) f32 packed weights
    out_ref:     (B*S, 128)       packed [tag logits | tag_un | zero pad]
    """
    ids = ids_ref[...]                                   # (BS, 2) int32
    wid = ids[:, 0:1]                                    # (BS, 1)
    tid = ids[:, 1:2]                                    # (BS, 1)
    vec = slab_ref[VEC0:VEC0 + 16, :]                    # (16, 128) biases / LN params

    # ---- embeddings: one-hot word lookup as a single MXU push ----
    vocab_iota = jax.lax.broadcasted_iota(jnp.int32, (B * S, VOCAB_PAD), 1)
    onehot = (vocab_iota == wid).astype(jnp.float32)     # (BS, VOCAB_PAD)
    x = jnp.dot(onehot, slab_ref[WE0:WE0 + VOCAB_PAD, 0:H],
                preferred_element_type=jnp.float32)      # (BS, H)
    x = x + slab_ref[POS0:POS0 + B * S, 0:H]             # pre-tiled position rows
    tsel = (tid == 0).astype(jnp.float32)                # (BS, 1) token-type select
    x = (x + tsel * slab_ref[TYPE0:TYPE0 + 1, 0:H]
           + (1.0 - tsel) * slab_ref[TYPE0 + 1:TYPE0 + 2, 0:H])

    def layer_norm(v, g, b):
        mu = jnp.mean(v, axis=-1, keepdims=True)
        var = jnp.mean((v - mu) ** 2, axis=-1, keepdims=True)
        return (v - mu) * jax.lax.rsqrt(var + 1e-12) * g + b

    x = layer_norm(x, vec[V_LNE_G:V_LNE_G + 1, 0:H], vec[V_LNE_B:V_LNE_B + 1, 0:H])

    # ---- fused QKV projection (1/sqrt(HEAD_DIM) folded into Q weights) ----
    qkv = (jnp.dot(x, slab_ref[WQKV0:WQKV0 + H, 0:3 * H],
                   preferred_element_type=jnp.float32)
           + vec[V_BQKV:V_BQKV + 1, 0:3 * H])            # (BS, 3H)
    q = qkv[:, 0:H]
    k = qkv[:, H:2 * H]
    v = qkv[:, 2 * H:3 * H]

    # ---- block-diagonal stacked attention: ONE score matmul + ONE P@V matmul --
    lane = jax.lax.broadcasted_iota(jnp.int32, (B * S, H), 1)
    head_masks = [((lane >= h * HEAD_DIM) &
                   (lane < (h + 1) * HEAD_DIM)).astype(jnp.float32)
                  for h in range(NUM_HEADS)]
    # rows ordered (head, batch, seq); off-head lanes zeroed so one matmul does
    # every (batch, head) score block at once
    q_bd = jnp.concatenate([q * m for m in head_masks], axis=0)   # (NH*BS, H)
    s = jax.lax.dot_general(q_bd, k, (((1,), (1,)), ((), ())),
                            preferred_element_type=jnp.float32)   # (NH*BS, BS)
    s = s + addmask_ref[...]                                       # batch-block + pad

    # ---- ONE softmax over the stacked score matrix ----
    s = s - jnp.max(s, axis=-1, keepdims=True)
    p = jnp.exp(s)
    p = p * pl.reciprocal(jnp.sum(p, axis=-1, keepdims=True), approx=True)

    # ---- ONE P@V matmul, then regroup heads with lane masks (VPU only) ----
    ctx_full = jnp.dot(p, v, preferred_element_type=jnp.float32)  # (NH*BS, H)
    ctx = head_masks[0] * ctx_full[0:B * S, :]
    for h in range(1, NUM_HEADS):
        ctx = ctx + head_masks[h] * ctx_full[h * B * S:(h + 1) * B * S, :]

    attn = (jnp.dot(ctx, slab_ref[WO0:WO0 + H, 0:H],
                    preferred_element_type=jnp.float32)
            + vec[V_BO:V_BO + 1, 0:H])
    x = layer_norm(x + attn, vec[V_LN1_G:V_LN1_G + 1, 0:H], vec[V_LN1_B:V_LN1_B + 1, 0:H])

    # ---- FFN ----
    hdn = (jnp.dot(x, slab_ref[W10:W10 + H, 0:FFN],
                   preferred_element_type=jnp.float32)
           + vec[V_B1:V_B1 + 1, 0:FFN])
    # TODO(synk): HF BERT uses exact erf GELU; tanh approximation kept here
    # (synthetic encoder, no bit-parity requirement).
    hdn = jax.nn.gelu(hdn)
    ffn = (jnp.dot(hdn, slab_ref[W20:W20 + FFN, 0:H],
                   preferred_element_type=jnp.float32)
           + vec[V_B2:V_B2 + 1, 0:H])
    x = layer_norm(x + ffn, vec[V_LN2_G:V_LN2_G + 1, 0:H], vec[V_LN2_B:V_LN2_B + 1, 0:H])

    # ---- folded tag head (dim_reduce @ [tag_outputs | tag_un_output]), padded
    #      to 128 lanes so the store is an unmasked full-lane vst ----
    # dropout is identity at inference time (eval mode)
    out_ref[...] = (jnp.dot(x, slab_ref[WC0:WC0 + H, :],
                            preferred_element_type=jnp.float32)
                    + vec[V_BTU:V_BTU + 1, :])            # (BS, 128)


# ---------------------------- pallas_call wrapper ------------------------------
def fused_forward(ids2, addmask, slab):
    vmem = pl.BlockSpec(memory_space=pltpu.MemorySpace.VMEM)
    return pl.pallas_call(
        fused_tag_kernel,
        in_specs=[vmem, vmem, vmem],
        out_specs=vmem,
        out_shape=jax.ShapeDtypeStruct((B * S, W_LANES), jnp.float32),
        cost_estimate=pl.CostEstimate(flops=550_000, transcendentals=2_048,
                                      bytes_accessed=180_000),
    )(ids2, addmask, slab)


# ---------------------------- parameter init (deterministic) ------------------
def init_params(key):
    ks = jax.random.split(key, 16)
    std = 0.02

    def lin(k, fan_in, fan_out):
        # nn.Linear weight is [out, in]; transpose to [in, out] for x @ W.
        w = jax.random.normal(k, (fan_out, fan_in), jnp.float32) * std
        return w.T

    # synthetic seq_encoder embeddings
    word_emb = jax.random.normal(ks[0], (VOCAB, H), jnp.float32) * std
    pos_emb = jax.random.normal(ks[1], (S, H), jnp.float32) * std
    type_emb = jax.random.normal(ks[2], (2, H), jnp.float32) * std

    # one transformer layer: fused QKV, 1/sqrt(HEAD_DIM) folded into Q columns
    scale = 1.0 / math.sqrt(HEAD_DIM)
    wq, wk, wv = lin(ks[3], H, H), lin(ks[4], H, H), lin(ks[5], H, H)
    wqkv = jnp.concatenate([wq * scale, wk, wv], axis=1)           # (H, 3H)
    bqkv = jnp.zeros((3 * H,), jnp.float32).at[0:H].multiply(scale)
    wo = lin(ks[6], H, H);  bo = jnp.zeros((H,), jnp.float32)
    w1 = lin(ks[7], H, FFN); b1 = jnp.zeros((FFN,), jnp.float32)
    w2 = lin(ks[8], FFN, H); b2 = jnp.zeros((H,), jnp.float32)

    # tag head (TransformerTag.__init__ with dim_reduce=2), folded offline:
    # wcomb = wr @ [wt | wu]  -- exact at eval because dropout is identity.
    wr = lin(ks[9], H, HR)                                         # tag_dim_reduce, bias=False
    wt = lin(ks[10], HR, NUM_LABELS)                               # tag_outputs
    wu = lin(ks[11], HR, 1)                                        # tag_un_output
    wcomb = wr @ jnp.concatenate([wt, wu], axis=1)                 # (H, L+1)
    btu = jnp.zeros((NUM_LABELS + 1,), jnp.float32)

    # -------- pack everything into one contiguous (SLAB_ROWS, 128) f32 slab ----
    slab = jnp.zeros((SLAB_ROWS, W_LANES), jnp.float32)
    slab = slab.at[WE0:WE0 + VOCAB, 0:H].set(word_emb)
    slab = slab.at[POS0:POS0 + B * S, 0:H].set(jnp.tile(pos_emb, (B, 1)))
    slab = slab.at[TYPE0:TYPE0 + 2, 0:H].set(type_emb)
    slab = slab.at[WQKV0:WQKV0 + H, 0:3 * H].set(wqkv)
    slab = slab.at[WO0:WO0 + H, 0:H].set(wo)
    slab = slab.at[W10:W10 + H, 0:FFN].set(w1)
    slab = slab.at[W20:W20 + FFN, 0:H].set(w2)
    slab = slab.at[WC0:WC0 + H, 0:NUM_LABELS + 1].set(wcomb)

    vec = jnp.zeros((16, W_LANES), jnp.float32)
    vec = vec.at[V_LNE_G, 0:H].set(1.0)
    vec = vec.at[V_LN1_G, 0:H].set(1.0)
    vec = vec.at[V_LN2_G, 0:H].set(1.0)
    vec = vec.at[V_BQKV, 0:3 * H].set(bqkv)
    vec = vec.at[V_BO, 0:H].set(bo)
    vec = vec.at[V_B1, 0:FFN].set(b1)
    vec = vec.at[V_B2, 0:H].set(b2)
    vec = vec.at[V_BTU, 0:NUM_LABELS + 1].set(btu)
    slab = slab.at[VEC0:VEC0 + 16, :].set(vec)

    # emb_lang_un (only used in the loss branch; created for parity)
    emb_lang_un = jax.random.normal(ks[12], (NUM_LANGS, 1), jnp.float32) * std
    return {'slab': slab, 'emb_lang_un': emb_lang_un}


# ---------------------------- full forward ------------------------------------
def transformer_tag_forward(params, input_ids, attention_mask, token_type_ids):
    # pack the two id tensors into one small int32 input (1 DMA)
    ids2 = jnp.stack([input_ids.reshape(-1).astype(jnp.int32),
                      token_type_ids.reshape(-1).astype(jnp.int32)], axis=1)  # (BS, 2)

    # additive mask precomputed in the wrapper (batch block-diagonal + padding),
    # already replicated over heads: rows ordered (head, batch, seq)
    mask_f = attention_mask.reshape(-1).astype(jnp.float32)                   # (BS,)
    rowb = (jnp.arange(NUM_HEADS * B * S, dtype=jnp.int32) // S) % B
    colb = jnp.arange(B * S, dtype=jnp.int32) // S
    addmask = jnp.where((rowb[:, None] == colb[None, :]) & (mask_f[None, :] > 0.0),
                        jnp.float32(0.0), jnp.float32(-1e9))                  # (NH*BS, BS)

    packed = fused_forward(ids2, addmask, params['slab'])                     # (BS, 128)
    packed = packed[:, :NUM_LABELS + 1].reshape(B, S, NUM_LABELS + 1)
    logits = packed[..., :NUM_LABELS]                                         # [B, S, L]
    tag_un3 = packed[..., NUM_LABELS:]                                        # [B, S, 1]

    if CONFIG['evi_un']:
        logits = jax.nn.elu(logits) + 1.0
    tag_un = tag_un3[..., 0] if CONFIG['tag_un'] else None                    # [B, S]

    # TODO(synk): labels / loss branch (MC-sampled NLL, lang_un, evi_un losses)
    # is training-only host logic and is not implemented (labels=None path).
    return logits, tag_un


# ---------------------------- main ---------------------------------------------
if __name__ == "__main__":
    key = jax.random.PRNGKey(0)
    pkey, dkey = jax.random.split(key)
    params = init_params(pkey)

    input_ids = jax.random.randint(dkey, (B, S), 0, VOCAB, dtype=jnp.int32)
    token_type_ids = jnp.zeros((B, S), dtype=jnp.int32)
    attention_mask = jnp.ones((B, S), dtype=jnp.int32)
    attention_mask = attention_mask.at[1, S - 2:].set(0)            # pad tail of 2nd seq

    fwd = jax.jit(transformer_tag_forward)
    logits, tag_un = fwd(params, input_ids, attention_mask, token_type_ids)
    jax.block_until_ready((logits, tag_un))

    assert logits.shape == (B, S, NUM_LABELS) and logits.dtype == jnp.float32
    assert tag_un.shape == (B, S) and tag_un.dtype == jnp.float32
    assert bool(jnp.all(jnp.isfinite(logits))) and bool(jnp.all(jnp.isfinite(tag_un)))
    print("KERNEL_OK")
</pallas_src>

<mosaic_0001>
module attributes {stable_mosaic.version = 11 : i64} {
  func.func @fused_tag_kernel(%arg0: memref<16x2xi32, #tpu.memory_space<vmem>>, %arg1: memref<32x16xf32, #tpu.memory_space<vmem>>, %arg2: memref<296x128xf32, #tpu.memory_space<vmem>>, %arg3: memref<16x128xf32, #tpu.memory_space<vmem>>) attributes {dimension_semantics = [], scalar_prefetch = 0 : i64, scratch_operands = 0 : i64, tpu.core_type = #tpu.core_type<tc>} {
    %c0 = arith.constant 0 : index
    %c0_0 = arith.constant 0 : index
    %0 = vector.load %arg0[%c0, %c0_0] : memref<16x2xi32, #tpu.memory_space<vmem>>, vector<16x2xi32>
    %1 = vector.extract_strided_slice %0 {offsets = [0, 0], sizes = [16, 1], strides = [1, 1]} : vector<16x2xi32> to vector<16x1xi32>
    %2 = vector.extract_strided_slice %0 {offsets = [0, 1], sizes = [16, 1], strides = [1, 1]} : vector<16x2xi32> to vector<16x1xi32>
    %c280 = arith.constant 280 : index
    %c0_1 = arith.constant 0 : index
    %3 = vector.load %arg2[%c280, %c0_1] : memref<296x128xf32, #tpu.memory_space<vmem>>, vector<16x128xf32>
    %4 = tpu.iota {dimensions = array<i32: 1>} : vector<16x64xi32>
    %5 = vector.broadcast %1 : vector<16x1xi32> to vector<16x64xi32>
    %6 = arith.cmpi eq, %4, %5 : vector<16x64xi32>
    %7 = arith.extui %6 : vector<16x64xi1> to vector<16x64xi32>
    %8 = arith.sitofp %7 : vector<16x64xi32> to vector<16x64xf32>
    %c0_2 = arith.constant 0 : index
    %c0_3 = arith.constant 0 : index
    %9 = vector.load %arg2[%c0_2, %c0_3] : memref<296x128xf32, #tpu.memory_space<vmem>>, vector<64x32xf32>
    %cst = arith.constant dense<0.000000e+00> : vector<16x32xf32>
    %10 = tpu.matmul %8, %9, %cst {dimension_numbers = #tpu.dot_dimension_numbers<[1], [0], [0], [1], [0, 0, 1, 1], [], []>} : vector<16x64xf32>, vector<64x32xf32>, vector<16x32xf32> -> vector<16x32xf32>
    %c64 = arith.constant 64 : index
    %c0_4 = arith.constant 0 : index
    %11 = vector.load %arg2[%c64, %c0_4] : memref<296x128xf32, #tpu.memory_space<vmem>>, vector<16x32xf32>
    %12 = arith.addf %10, %11 : vector<16x32xf32>
    %c0_i32 = arith.constant 0 : i32
    %13 = vector.broadcast %c0_i32 : i32 to vector<16x1xi32>
    %14 = arith.cmpi eq, %2, %13 : vector<16x1xi32>
    %15 = arith.extui %14 : vector<16x1xi1> to vector<16x1xi32>
    %16 = arith.sitofp %15 : vector<16x1xi32> to vector<16x1xf32>
    %c80 = arith.constant 80 : index
    %c0_5 = arith.constant 0 : index
    %17 = vector.load %arg2[%c80, %c0_5] : memref<296x128xf32, #tpu.memory_space<vmem>>, vector<1x32xf32>
    %18 = vector.broadcast %16 : vector<16x1xf32> to vector<16x32xf32>
    %19 = vector.broadcast %17 : vector<1x32xf32> to vector<16x32xf32>
    %20 = arith.mulf %18, %19 : vector<16x32xf32>
    %21 = arith.addf %12, %20 : vector<16x32xf32>
    %cst_6 = arith.constant 1.000000e+00 : f32
    %22 = vector.broadcast %cst_6 : f32 to vector<16x1xf32>
    %23 = arith.subf %22, %16 : vector<16x1xf32>
    %c81 = arith.constant 81 : index
    %c0_7 = arith.constant 0 : index
    %24 = vector.load %arg2[%c81, %c0_7] : memref<296x128xf32, #tpu.memory_space<vmem>>, vector<1x32xf32>
    %25 = vector.broadcast %23 : vector<16x1xf32> to vector<16x32xf32>
    %26 = vector.broadcast %24 : vector<1x32xf32> to vector<16x32xf32>
    %27 = arith.mulf %25, %26 : vector<16x32xf32>
    %28 = arith.addf %21, %27 : vector<16x32xf32>
    %29 = vector.extract_strided_slice %3 {offsets = [0, 0], sizes = [1, 32], strides = [1, 1]} : vector<16x128xf32> to vector<1x32xf32>
    %30 = vector.extract_strided_slice %3 {offsets = [1, 0], sizes = [1, 32], strides = [1, 1]} : vector<16x128xf32> to vector<1x32xf32>
    %cst_8 = arith.constant dense<0.000000e+00> : vector<16xf32>
    %31 = vector.multi_reduction <add>, %28, %cst_8 [1] : vector<16x32xf32> to vector<16xf32>
    %32 = vector.shape_cast %31 : vector<16xf32> to vector<16x1xf32>
    %cst_9 = arith.constant 3.200000e+01 : f32
    %33 = vector.broadcast %cst_9 : f32 to vector<16x1xf32>
    %34 = arith.divf %32, %33 : vector<16x1xf32>
    %35 = vector.broadcast %34 : vector<16x1xf32> to vector<16x32xf32>
    %36 = arith.subf %28, %35 : vector<16x32xf32>
    %37 = arith.mulf %36, %36 : vector<16x32xf32>
    %cst_10 = arith.constant dense<0.000000e+00> : vector<16xf32>
    %38 = vector.multi_reduction <add>, %37, %cst_10 [1] : vector<16x32xf32> to vector<16xf32>
    %39 = vector.shape_cast %38 : vector<16xf32> to vector<16x1xf32>
    %cst_11 = arith.constant 3.200000e+01 : f32
    %40 = vector.broadcast %cst_11 : f32 to vector<16x1xf32>
    %41 = arith.divf %39, %40 : vector<16x1xf32>
    %42 = vector.broadcast %34 : vector<16x1xf32> to vector<16x32xf32>
    %43 = arith.subf %28, %42 : vector<16x32xf32>
    %cst_12 = arith.constant 9.99999996E-13 : f32
    %44 = vector.broadcast %cst_12 : f32 to vector<16x1xf32>
    %45 = arith.addf %41, %44 : vector<16x1xf32>
    %46 = math.rsqrt %45 : vector<16x1xf32>
    %47 = vector.broadcast %46 : vector<16x1xf32> to vector<16x32xf32>
    %48 = arith.mulf %43, %47 : vector<16x32xf32>
    %49 = vector.broadcast %29 : vector<1x32xf32> to vector<16x32xf32>
    %50 = arith.mulf %48, %49 : vector<16x32xf32>
    %51 = vector.broadcast %30 : vector<1x32xf32> to vector<16x32xf32>
    %52 = arith.addf %50, %51 : vector<16x32xf32>
    %c88 = arith.constant 88 : index
    %c0_13 = arith.constant 0 : index
    %53 = vector.load %arg2[%c88, %c0_13] : memref<296x128xf32, #tpu.memory_space<vmem>>, vector<32x96xf32>
    %cst_14 = arith.constant dense<0.000000e+00> : vector<16x96xf32>
    %54 = tpu.matmul %52, %53, %cst_14 {dimension_numbers = #tpu.dot_dimension_numbers<[1], [0], [0], [1], [0, 0, 1, 1], [], []>} : vector<16x32xf32>, vector<32x96xf32>, vector<16x96xf32> -> vector<16x96xf32>
    %55 = vector.extract_strided_slice %3 {offsets = [6, 0], sizes = [1, 96], strides = [1, 1]} : vector<16x128xf32> to vector<1x96xf32>
    %56 = vector.broadcast %55 : vector<1x96xf32> to vector<16x96xf32>
    %57 = arith.addf %54, %56 : vector<16x96xf32>
    %58 = vector.extract_strided_slice %57 {offsets = [0, 0], sizes = [16, 32], strides = [1, 1]} : vector<16x96xf32> to vector<16x32xf32>
    %59 = vector.extract_strided_slice %57 {offsets = [0, 32], sizes = [16, 32], strides = [1, 1]} : vector<16x96xf32> to vector<16x32xf32>
    %60 = vector.extract_strided_slice %57 {offsets = [0, 64], sizes = [16, 32], strides = [1, 1]} : vector<16x96xf32> to vector<16x32xf32>
    %61 = tpu.iota {dimensions = array<i32: 1>} : vector<16x32xi32>
    %c0_i32_15 = arith.constant 0 : i32
    %62 = vector.broadcast %c0_i32_15 : i32 to vector<16x32xi32>
    %63 = arith.cmpi sge, %61, %62 : vector<16x32xi32>
    %c16_i32 = arith.constant 16 : i32
    %64 = vector.broadcast %c16_i32 : i32 to vector<16x32xi32>
    %65 = arith.cmpi slt, %61, %64 : vector<16x32xi32>
    %66 = arith.andi %63, %65 : vector<16x32xi1>
    %67 = arith.extui %66 : vector<16x32xi1> to vector<16x32xi32>
    %68 = arith.sitofp %67 : vector<16x32xi32> to vector<16x32xf32>
    %c16_i32_16 = arith.constant 16 : i32
    %69 = vector.broadcast %c16_i32_16 : i32 to vector<16x32xi32>
    %70 = arith.cmpi sge, %61, %69 : vector<16x32xi32>
    %c32_i32 = arith.constant 32 : i32
    %71 = vector.broadcast %c32_i32 : i32 to vector<16x32xi32>
    %72 = arith.cmpi slt, %61, %71 : vector<16x32xi32>
    %73 = arith.andi %70, %72 : vector<16x32xi1>
    %74 = arith.extui %73 : vector<16x32xi1> to vector<16x32xi32>
    %75 = arith.sitofp %74 : vector<16x32xi32> to vector<16x32xf32>
    %76 = arith.mulf %58, %68 : vector<16x32xf32>
    %77 = arith.mulf %58, %75 : vector<16x32xf32>
    %78 = tpu.concatenate %76, %77 in 0 : vector<16x32xf32>, vector<16x32xf32> -> vector<32x32xf32>
    %cst_17 = arith.constant dense<0.000000e+00> : vector<32x16xf32>
    %79 = tpu.matmul %78, %59, %cst_17 {dimension_numbers = #tpu.dot_dimension_numbers<[1], [1], [0], [0], [0, 0, 1, 0], [], []>} : vector<32x32xf32>, vector<16x32xf32>, vector<32x16xf32> -> vector<32x16xf32>
    %c0_18 = arith.constant 0 : index
    %c0_19 = arith.constant 0 : index
    %80 = vector.load %arg1[%c0_18, %c0_19] : memref<32x16xf32, #tpu.memory_space<vmem>>, vector<32x16xf32>
    %81 = arith.addf %79, %80 : vector<32x16xf32>
    %cst_20 = arith.constant dense<0xFF800000> : vector<32xf32>
    %82 = vector.multi_reduction <maximumf>, %81, %cst_20 [1] : vector<32x16xf32> to vector<32xf32>
    %83 = vector.shape_cast %82 : vector<32xf32> to vector<32x1xf32>
    %84 = vector.broadcast %83 : vector<32x1xf32> to vector<32x16xf32>
    %85 = arith.subf %81, %84 : vector<32x16xf32>
    %86 = math.exp %85 : vector<32x16xf32>
    %cst_21 = arith.constant dense<0.000000e+00> : vector<32xf32>
    %87 = vector.multi_reduction <add>, %86, %cst_21 [1] : vector<32x16xf32> to vector<32xf32>
    %88 = vector.shape_cast %87 : vector<32xf32> to vector<32x1xf32>
    %89 = tpu.reciprocal %88 {approx = true} : vector<32x1xf32> -> vector<32x1xf32>
    %90 = vector.broadcast %89 : vector<32x1xf32> to vector<32x16xf32>
    %91 = arith.mulf %86, %90 : vector<32x16xf32>
    %cst_22 = arith.constant dense<0.000000e+00> : vector<32x32xf32>
    %92 = tpu.matmul %91, %60, %cst_22 {dimension_numbers = #tpu.dot_dimension_numbers<[1], [0], [0], [1], [0, 0, 1, 1], [], []>} : vector<32x16xf32>, vector<16x32xf32>, vector<32x32xf32> -> vector<32x32xf32>
    %93 = vector.extract_strided_slice %92 {offsets = [0, 0], sizes = [16, 32], strides = [1, 1]} : vector<32x32xf32> to vector<16x32xf32>
    %94 = arith.mulf %68, %93 : vector<16x32xf32>
    %95 = vector.extract_strided_slice %92 {offsets = [16, 0], sizes = [16, 32], strides = [1, 1]} : vector<32x32xf32> to vector<16x32xf32>
    %96 = arith.mulf %75, %95 : vector<16x32xf32>
    %97 = arith.addf %94, %96 : vector<16x32xf32>
    %c120 = arith.constant 120 : index
    %c0_23 = arith.constant 0 : index
    %98 = vector.load %arg2[%c120, %c0_23] : memref<296x128xf32, #tpu.memory_space<vmem>>, vector<32x32xf32>
    %cst_24 = arith.constant dense<0.000000e+00> : vector<16x32xf32>
    %99 = tpu.matmul %97, %98, %cst_24 {dimension_numbers = #tpu.dot_dimension_numbers<[1], [0], [0], [1], [0, 0, 1, 1], [], []>} : vector<16x32xf32>, vector<32x32xf32>, vector<16x32xf32> -> vector<16x32xf32>
    %100 = vector.extract_strided_slice %3 {offsets = [7, 0], sizes = [1, 32], strides = [1, 1]} : vector<16x128xf32> to vector<1x32xf32>
    %101 = vector.broadcast %100 : vector<1x32xf32> to vector<16x32xf32>
    %102 = arith.addf %99, %101 : vector<16x32xf32>
    %103 = arith.addf %52, %102 : vector<16x32xf32>
    %104 = vector.extract_strided_slice %3 {offsets = [2, 0], sizes = [1, 32], strides = [1, 1]} : vector<16x128xf32> to vector<1x32xf32>
    %105 = vector.extract_strided_slice %3 {offsets = [3, 0], sizes = [1, 32], strides = [1, 1]} : vector<16x128xf32> to vector<1x32xf32>
    %cst_25 = arith.constant dense<0.000000e+00> : vector<16xf32>
    %106 = vector.multi_reduction <add>, %103, %cst_25 [1] : vector<16x32xf32> to vector<16xf32>
    %107 = vector.shape_cast %106 : vector<16xf32> to vector<16x1xf32>
    %cst_26 = arith.constant 3.200000e+01 : f32
    %108 = vector.broadcast %cst_26 : f32 to vector<16x1xf32>
    %109 = arith.divf %107, %108 : vector<16x1xf32>
    %110 = vector.broadcast %109 : vector<16x1xf32> to vector<16x32xf32>
    %111 = arith.subf %103, %110 : vector<16x32xf32>
    %112 = arith.mulf %111, %111 : vector<16x32xf32>
    %cst_27 = arith.constant dense<0.000000e+00> : vector<16xf32>
    %113 = vector.multi_reduction <add>, %112, %cst_27 [1] : vector<16x32xf32> to vector<16xf32>
    %114 = vector.shape_cast %113 : vector<16xf32> to vector<16x1xf32>
    %cst_28 = arith.constant 3.200000e+01 : f32
    %115 = vector.broadcast %cst_28 : f32 to vector<16x1xf32>
    %116 = arith.divf %114, %115 : vector<16x1xf32>
    %117 = vector.broadcast %109 : vector<16x1xf32> to vector<16x32xf32>
    %118 = arith.subf %103, %117 : vector<16x32xf32>
    %cst_29 = arith.constant 9.99999996E-13 : f32
    %119 = vector.broadcast %cst_29 : f32 to vector<16x1xf32>
    %120 = arith.addf %116, %119 : vector<16x1xf32>
    %121 = math.rsqrt %120 : vector<16x1xf32>
    %122 = vector.broadcast %121 : vector<16x1xf32> to vector<16x32xf32>
    %123 = arith.mulf %118, %122 : vector<16x32xf32>
    %124 = vector.broadcast %104 : vector<1x32xf32> to vector<16x32xf32>
    %125 = arith.mulf %123, %124 : vector<16x32xf32>
    %126 = vector.broadcast %105 : vector<1x32xf32> to vector<16x32xf32>
    %127 = arith.addf %125, %126 : vector<16x32xf32>
    %c152 = arith.constant 152 : index
    %c0_30 = arith.constant 0 : index
    %128 = vector.load %arg2[%c152, %c0_30] : memref<296x128xf32, #tpu.memory_space<vmem>>, vector<32x64xf32>
    %cst_31 = arith.constant dense<0.000000e+00> : vector<16x64xf32>
    %129 = tpu.matmul %127, %128, %cst_31 {dimension_numbers = #tpu.dot_dimension_numbers<[1], [0], [0], [1], [0, 0, 1, 1], [], []>} : vector<16x32xf32>, vector<32x64xf32>, vector<16x64xf32> -> vector<16x64xf32>
    %130 = vector.extract_strided_slice %3 {offsets = [8, 0], sizes = [1, 64], strides = [1, 1]} : vector<16x128xf32> to vector<1x64xf32>
    %131 = vector.broadcast %130 : vector<1x64xf32> to vector<16x64xf32>
    %132 = arith.addf %129, %131 : vector<16x64xf32>
    %133 = arith.mulf %132, %132 : vector<16x64xf32>
    %134 = arith.mulf %132, %133 : vector<16x64xf32>
    %cst_32 = arith.constant 4.471500e-02 : f32
    %135 = vector.broadcast %cst_32 : f32 to vector<16x64xf32>
    %136 = arith.mulf %135, %134 : vector<16x64xf32>
    %137 = arith.addf %132, %136 : vector<16x64xf32>
    %cst_33 = arith.constant 0.797884583 : f32
    %138 = vector.broadcast %cst_33 : f32 to vector<16x64xf32>
    %139 = arith.mulf %138, %137 : vector<16x64xf32>
    %140 = math.tanh %139 : vector<16x64xf32>
    %cst_34 = arith.constant 1.000000e+00 : f32
    %141 = vector.broadcast %cst_34 : f32 to vector<16x64xf32>
    %142 = arith.addf %141, %140 : vector<16x64xf32>
    %cst_35 = arith.constant 5.000000e-01 : f32
    %143 = vector.broadcast %cst_35 : f32 to vector<16x64xf32>
    %144 = arith.mulf %143, %142 : vector<16x64xf32>
    %145 = arith.mulf %132, %144 : vector<16x64xf32>
    %c184 = arith.constant 184 : index
    %c0_36 = arith.constant 0 : index
    %146 = vector.load %arg2[%c184, %c0_36] : memref<296x128xf32, #tpu.memory_space<vmem>>, vector<64x32xf32>
    %cst_37 = arith.constant dense<0.000000e+00> : vector<16x32xf32>
    %147 = tpu.matmul %145, %146, %cst_37 {dimension_numbers = #tpu.dot_dimension_numbers<[1], [0], [0], [1], [0, 0, 1, 1], [], []>} : vector<16x64xf32>, vector<64x32xf32>, vector<16x32xf32> -> vector<16x32xf32>
    %148 = vector.extract_strided_slice %3 {offsets = [9, 0], sizes = [1, 32], strides = [1, 1]} : vector<16x128xf32> to vector<1x32xf32>
    %149 = vector.broadcast %148 : vector<1x32xf32> to vector<16x32xf32>
    %150 = arith.addf %147, %149 : vector<16x32xf32>
    %151 = arith.addf %127, %150 : vector<16x32xf32>
    %152 = vector.extract_strided_slice %3 {offsets = [4, 0], sizes = [1, 32], strides = [1, 1]} : vector<16x128xf32> to vector<1x32xf32>
    %153 = vector.extract_strided_slice %3 {offsets = [5, 0], sizes = [1, 32], strides = [1, 1]} : vector<16x128xf32> to vector<1x32xf32>
    %cst_38 = arith.constant dense<0.000000e+00> : vector<16xf32>
    %154 = vector.multi_reduction <add>, %151, %cst_38 [1] : vector<16x32xf32> to vector<16xf32>
    %155 = vector.shape_cast %154 : vector<16xf32> to vector<16x1xf32>
    %cst_39 = arith.constant 3.200000e+01 : f32
    %156 = vector.broadcast %cst_39 : f32 to vector<16x1xf32>
    %157 = arith.divf %155, %156 : vector<16x1xf32>
    %158 = vector.broadcast %157 : vector<16x1xf32> to vector<16x32xf32>
    %159 = arith.subf %151, %158 : vector<16x32xf32>
    %160 = arith.mulf %159, %159 : vector<16x32xf32>
    %cst_40 = arith.constant dense<0.000000e+00> : vector<16xf32>
    %161 = vector.multi_reduction <add>, %160, %cst_40 [1] : vector<16x32xf32> to vector<16xf32>
    %162 = vector.shape_cast %161 : vector<16xf32> to vector<16x1xf32>
    %cst_41 = arith.constant 3.200000e+01 : f32
    %163 = vector.broadcast %cst_41 : f32 to vector<16x1xf32>
    %164 = arith.divf %162, %163 : vector<16x1xf32>
    %165 = vector.broadcast %157 : vector<16x1xf32> to vector<16x32xf32>
    %166 = arith.subf %151, %165 : vector<16x32xf32>
    %cst_42 = arith.constant 9.99999996E-13 : f32
    %167 = vector.broadcast %cst_42 : f32 to vector<16x1xf32>
    %168 = arith.addf %164, %167 : vector<16x1xf32>
    %169 = math.rsqrt %168 : vector<16x1xf32>
    %170 = vector.broadcast %169 : vector<16x1xf32> to vector<16x32xf32>
    %171 = arith.mulf %166, %170 : vector<16x32xf32>
    %172 = vector.broadcast %152 : vector<1x32xf32> to vector<16x32xf32>
    %173 = arith.mulf %171, %172 : vector<16x32xf32>
    %174 = vector.broadcast %153 : vector<1x32xf32> to vector<16x32xf32>
    %175 = arith.addf %173, %174 : vector<16x32xf32>
    %c248 = arith.constant 248 : index
    %c0_43 = arith.constant 0 : index
    %176 = vector.load %arg2[%c248, %c0_43] : memref<296x128xf32, #tpu.memory_space<vmem>>, vector<32x128xf32>
    %cst_44 = arith.constant dense<0.000000e+00> : vector<16x128xf32>
    %177 = tpu.matmul %175, %176, %cst_44 {dimension_numbers = #tpu.dot_dimension_numbers<[1], [0], [0], [1], [0, 0, 1, 1], [], []>} : vector<16x32xf32>, vector<32x128xf32>, vector<16x128xf32> -> vector<16x128xf32>
    %178 = vector.extract_strided_slice %3 {offsets = [10, 0], sizes = [1, 128], strides = [1, 1]} : vector<16x128xf32> to vector<1x128xf32>
    %179 = vector.broadcast %178 : vector<1x128xf32> to vector<16x128xf32>
    %180 = arith.addf %177, %179 : vector<16x128xf32>
    %c0_45 = arith.constant 0 : index
    %c0_46 = arith.constant 0 : index
    %181 = vector.load %arg3[%c0_45, %c0_46] : memref<16x128xf32, #tpu.memory_space<vmem>>, vector<16x128xf32>
    tpu.vector_store %arg3[%c0_45, %c0_46], %180 {strides = array<i32>} : memref<16x128xf32, #tpu.memory_space<vmem>>, vector<16x128xf32>,
    return
  }
}

</mosaic_0001>

<llo_original>
// kernel: transformer_tag_forward.1
$region0: #{transformer_tag_forward.1}
  #allocation0 [shape = 'u32[]', space=smem, size = 0x4, offset = 0x4, fixed_abs, tag = 'smem constant byte address 0x4 - core index']
  #allocation1 [shape = 'u32[72,128]{1,0:T(1,128)}', space=vmem, size = 0x9000, scoped, tag = 'internal scratch']
  %s0 = inlined_call_operand.vmem [shape: s32[16,2], index: 0, kind: input, shape index: {}]
  %s1 = inlined_call_operand.vmem [shape: f32[32,16], index: 1, kind: input, shape index: {}]
  %s2 = inlined_call_operand.hbm [shape: f32[296,128], index: 2, kind: input, shape index: {}]
  %s3 = inlined_call_operand.vmem [shape: f32[16,128], index: 3, kind: output, shape index: {}]
  %s4 = sld [smem:[#allocation0]]
  $region26: #{transformer_tag_forward.1} parent=0
    _
  %s6 = ssub.s32 1, %s4
  %s7 = scalar_select 0, %s6, %s4
  $region1: #{transformer_tag_forward.1} parent=0
    #allocation2 [shape = 'u8[151552]{0}', space=vmem, size = 0x25000, scoped, tag = 'input window, operand 2, single buffered']
    #allocation3 [shape = 's32[1]{0}', space=sflag, size = 0x4, scoped, tag = 'scoped memory for transformer_tag_forward.1']
    %8 = vsyncpa [#allocation3], 0
    // Predicated region
    $region2: #{transformer_tag_forward.1} parent=1 // pred_check
      _
    $region3: #{transformer_tag_forward.1} parent=1 // pred_check_branch
      %10 = sbr.rel (0) target = $region5
    $region4: #{transformer_tag_forward.1} parent=1 // pred_region
      _
    $region5: #{transformer_tag_forward.1} parent=1 // pred_fallthru
      _
    // Predicated region
    $region6: #{transformer_tag_forward.1} parent=1 // pred_check
      _
    $region7: #{transformer_tag_forward.1} parent=1 // pred_check_branch
      %12 = sbr.rel (0) target = $region9
    $region8: #{transformer_tag_forward.1} parent=1 // pred_region
      _
    $region9: #{transformer_tag_forward.1} parent=1 // pred_fallthru
      _
    // Predicated region
    $region10: #{transformer_tag_forward.1} parent=1 // pred_check
      _
    $region11: #{transformer_tag_forward.1} parent=1 // pred_check_branch
      %14 = sbr.rel (0) target = $region13
    $region12: #{transformer_tag_forward.1} parent=1 // pred_region
      %16 = vsyncadd [#allocation3], 0
      %s17 = sshll.u32 %s2, 4
      %s18 = int_to_ptr.hbm [resolvable:$true] %s17
      %s19 = sshll.u32 [#allocation2], 4
      %s20 = int_to_ptr.vmem [resolvable:$true] %s19
      %25 = dma.hbm_to_vmem [thread:$0]  %s18, 4736, %s20, [#allocation3], 128, 128, 8
    $region13: #{transformer_tag_forward.1} parent=1 // pred_fallthru
      _
    // Predicated region
    $region14: #{transformer_tag_forward.1} parent=1 // pred_check
      _
    $region15: #{transformer_tag_forward.1} parent=1 // pred_check_branch
      %27 = sbr.rel (0) target = $region17
    $region16: #{transformer_tag_forward.1} parent=1 // pred_region
      %29 = dma.done [#allocation3], 4736
    $region17: #{transformer_tag_forward.1} parent=1 // pred_fallthru
      _
    %v30 = vld [vmem:[%s0] sm:$0xff]
    %v31 = vld [vmem:[%s0 + $0x8] sm:$0xff]
    %v32 = vld [vmem:[#allocation2 + $0x118] sm:$0xff]
    %v33 = vld [vmem:[#allocation2 + $0x120] sm:$0xff]
    %v34 = vlaneseq
    %v35 = vand.u32 %v34, 127
    %36 = vset.pattern.permute.xlu0 0
    %37 = vperm.xlu0 %36, %v30
    %v38 = vpop.permute.xlu0 %37
    %39 = vset.pattern.permute.xlu0 0
    %40 = vperm.xlu0 %39, %v31
    %v41 = vpop.permute.xlu0 %40
    %vm42 = vcmp.eq.s32.totalorder %v35, %v38
    %vm43 = vcmp.eq.s32.totalorder %v35, %v41
    %v44 = vsel %vm42, 1, 0
    %v45 = vsel %vm43, 1, 0
    %v46 = vcvt.s32.f32 %v44
    %v47 = vcvt.s32.f32 %v45
    %v48 = vld [vmem:[#allocation2] sm:$0xff]
    %v49 = vld [vmem:[#allocation2 + $0x8] sm:$0xff]
    %v50 = vld [vmem:[#allocation2 + $0x10] sm:$0xff]
    %v51 = vld [vmem:[#allocation2 + $0x18] sm:$0xff]
    %v52 = vld [vmem:[#allocation2 + $0x20] sm:$0xff]
    %v53 = vld [vmem:[#allocation2 + $0x28] sm:$0xff]
    %v54 = vld [vmem:[#allocation2 + $0x30] sm:$0xff]
    %v55 = vld [vmem:[#allocation2 + $0x38] sm:$0xff]
    %v56 = vld [vmem:[#allocation2 + $0x40] sm:$0xff]
    %v57 = vld [vmem:[#allocation2 + $0x48] sm:$0xff]
    %vm58 = vcmask 523264
    %v60 = vsel %vm58, %v46, 0
    %v63 = vsel %vm58, %v47, 0
    %65 = vmatpush.msra.mxu0 0.0
    %66 = vmatpush.msra.mxu0 0.0
    %67 = vmatpush.msra.mxu0 0.0
    %68 = vmatpush.msra.mxu0 0.0
    %69 = vmatpush.msra.mxu0 0.0
    %70 = vmatpush.msra.mxu0 0.0
    %71 = vmatpush.msra.mxu0 0.0
    %72 = vmatpush.msra.mxu0 0.0
    %73 = vmatpush.msra.mxu0 %v55
    %74 = vmatpush.msra.mxu0 %v54
    %75 = vmatpush.msra.mxu0 %v53
    %76 = vmatpush.msra.mxu0 %v52
    %77 = vmatpush.msra.mxu0 %v51
    %78 = vmatpush.msra.mxu0 %v50
    %79 = vmatpush.msra.mxu0 %v49
    %80 = vmatpush.msra.mxu0 %v48
    %81 = vmatmul.f32.gmra.mxu0 %v60
    %v82 = vpop.f32.mrf.mxu0
    %v83 = vadd.f32 %v56, %v82
    %84 = vmatmul.f32.gmra.mxu0 %v63
    %v85 = vpop.f32.mrf.mxu0
    %v86 = vadd.f32 %v57, %v85
    %87 = vdwg.mxu0
    %vm88 = vcmp.eq.s32.totalorder %v30, 0
    %vm89 = vcmp.eq.s32.totalorder %v31, 0
    %v90 = vsel %vm88, 1, 0
    %v91 = vsel %vm89, 1, 0
    %v92 = vcvt.s32.f32 %v90
    %v93 = vcvt.s32.f32 %v91
    %v94 = vld [vmem:[#allocation2 + $0x50] sm:$0x1]
    %96 = vset.pattern.permute.xlu0 1
    %97 = vperm.xlu0 %96, %v92
    %v98 = vpop.permute.xlu0 %97
    %101 = vset.pattern.permute.xlu0 1
    %102 = vperm.xlu0 %101, %v93
    %v103 = vpop.permute.xlu0 %102
    %v105 = vperm.slane %v94, 0
    %v106 = vmul.f32 %v98, %v105
    %v107 = vmul.f32 %v103, %v105
    %v108 = vadd.f32 %v83, %v106
    %v109 = vadd.f32 %v86, %v107
    %v110 = vsub.f32 1.0, %v92
    %v111 = vsub.f32 1.0, %v93
    %v112 = vld [vmem:[#allocation2 + $0x51] sm:$0x1]
    %114 = vset.pattern.permute.xlu0 1
    %115 = vperm.xlu0 %114, %v110
    %v116 = vpop.permute.xlu0 %115
    %119 = vset.pattern.permute.xlu0 1
    %120 = vperm.xlu0 %119, %v111
    %v121 = vpop.permute.xlu0 %120
    %v123 = vperm.slane %v112, 0
    %v124 = vmul.f32 %v116, %v123
    %v125 = vmul.f32 %v121, %v123
    %v126 = vadd.f32 %v108, %v124
    %v127 = vadd.f32 %v109, %v125
    %vm128 = vcmask 261120
    %v129 = vsel %vm128, %v126, 0.0
    %130 = vadd.xlane.f32.xlu0 %v129
    %v131 = vpop.xlane.xlu0 %130
    %v132 = vsel %vm128, %v127, 0.0
    %133 = vadd.xlane.f32.xlu0 %v132
    %v134 = vpop.xlane.xlu0 %133
    %v135 = vrcp.pop 32.0
    %v136 = vmul.f32 32.0, %v135
    %v137 = vsub.f32 1.0, %v136
    %v138 = vmul.f32 %v135, %v137
    %v139 = vadd.f32 %v135, %v138
    %vm140 = vweird.f32 %v135
    %v141 = vsel %vm140, %v135, %v139
    %v142 = vmul.f32 %v131, %v141
    %v143 = vmul.f32 %v134, %v141
    %v144 = vsub.f32 %v126, %v142
    %v145 = vsub.f32 %v127, %v143
    %v146 = vmul.f32 %v144, %v144
    %v147 = vmul.f32 %v145, %v145
    %v148 = vsel %vm128, %v146, 0.0
    %149 = vadd.xlane.f32.xlu0 %v148
    %v150 = vpop.xlane.xlu0 %149
    %v151 = vsel %vm128, %v147, 0.0
    %152 = vadd.xlane.f32.xlu0 %v151
    %v153 = vpop.xlane.xlu0 %152
    %v154 = vmul.f32 %v150, %v141
    %v155 = vmul.f32 %v153, %v141
    %v156 = vadd.f32 %v154, 1e-12
    %v157 = vadd.f32 %v155, 1e-12
    %v158 = vrsqrt.pop %v156
    %v159 = vmul.f32 %v158, %v156
    %v160 = vmul.f32 %v159, %v158
    %v161 = vmul.f32 0.5, %v160
    %v162 = vsub.f32 1.5, %v161
    %v163 = vmul.f32 %v158, %v162
    %vm164 = vweird.f32 %v156
    %vm165 = vweird.f32 %v158
    %vm166 = vmor %vm164, %vm165
    %v167 = vsel %vm166, %v158, %v163
    %v168 = vrsqrt.pop %v157
    %v169 = vmul.f32 %v168, %v157
    %v170 = vmul.f32 %v169, %v168
    %v171 = vmul.f32 0.5, %v170
    %v172 = vsub.f32 1.5, %v171
    %v173 = vmul.f32 %v168, %v172
    %vm174 = vweird.f32 %v157
    %vm175 = vweird.f32 %v168
    %vm176 = vmor %vm174, %vm175
    %v177 = vsel %vm176, %v168, %v173
    %v178 = vmul.f32 %v144, %v167
    %v179 = vmul.f32 %v145, %v177
    %v180 = vperm.slane %v32, 0
    %v181 = vmul.f32 %v178, %v180
    %v182 = vmul.f32 %v179, %v180
    %v183 = vperm.slane %v32, 1
    %v184 = vadd.f32 %v181, %v183
    %v185 = vadd.f32 %v182, %v183
    %v186 = vld [vmem:[#allocation2 + $0x58] sm:$0xff]
    %v187 = vld [vmem:[#allocation2 + $0x60] sm:$0xff]
    %v188 = vld [vmem:[#allocation2 + $0x68] sm:$0xff]
    %v189 = vld [vmem:[#allocation2 + $0x70] sm:$0xff]
    %v190 = vperm.slane %v32, 6
    %v192 = vsel %vm128, %v184, 0
    %v195 = vsel %vm128, %v185, 0
    %197 = vmatpush.msra.mxu0 0.0
    %198 = vmatpush.msra.mxu0 0.0
    %199 = vmatpush.msra.mxu0 0.0
    %200 = vmatpush.msra.mxu0 0.0
    %201 = vmatpush.msra.mxu0 0.0
    %202 = vmatpush.msra.mxu0 0.0
    %203 = vmatpush.msra.mxu0 0.0
    %204 = vmatpush.msra.mxu0 0.0
    %205 = vmatpush.msra.mxu0 0.0
    %206 = vmatpush.msra.mxu0 0.0
    %207 = vmatpush.msra.mxu0 0.0
    %208 = vmatpush.msra.mxu0 0.0
    %209 = vmatpush.msra.mxu0 %v189
    %210 = vmatpush.msra.mxu0 %v188
    %211 = vmatpush.msra.mxu0 %v187
    %212 = vmatpush.msra.mxu0 %v186
    %213 = vmatmul.f32.gmra.mxu0 %v192
    %v214 = vpop.f32.mrf.mxu0
    %v215 = vadd.f32 %v190, %v214
    %216 = vmatmul.f32.gmra.mxu0 %v195
    %v217 = vpop.f32.mrf.mxu0
    %v218 = vadd.f32 %v190, %v217
    %219 = vdwg.mxu0
    %vm220 = vcmp.ge.s32.totalorder %v35, 0
    %vm221 = vcmp.lt.s32.totalorder %v35, 16
    %vm222 = vmand %vm220, %vm221
    %v223 = vsel %vm222, 1, 0
    %v224 = vcvt.s32.f32 %v223
    %vm225 = vcmp.ge.s32.totalorder %v35, 16
    %vm226 = vcmp.lt.s32.totalorder %v35, 32
    %vm227 = vmand %vm225, %vm226
    %v228 = vsel %vm227, 1, 0
    %v229 = vcvt.s32.f32 %v228
    %v230 = vmul.f32 %v215, %v224
    %v231 = vmul.f32 %v218, %v224
    %v232 = vmul.f32 %v215, %v229
    %v233 = vmul.f32 %v218, %v229
    %v234 = vld [vmem:[%s1] sm:$0xff]
    %v235 = vld [vmem:[%s1 + $0x8] sm:$0xff]
    %v236 = vld [vmem:[%s1 + $0x10] sm:$0xff]
    %v237 = vld [vmem:[%s1 + $0x18] sm:$0xff]
    %240 = vrot.lane.b32.xlu0 %v215, 96
    %v241 = vpop.permute.xlu0 %240
    %242 = vrot.lane.b32.xlu0 %v218, 96
    %v243 = vpop.permute.xlu0 %242
    %v245 = vsel %vm128, %v230, 0
    %v248 = vsel %vm128, %v231, 0
    %v251 = vsel %vm128, %v232, 0
    %v254 = vsel %vm128, %v233, 0
    %v256 = vsel %vm128, %v241, 0
    %v258 = vsel %vm128, %v243, 0
    %260 = vmatpush.xpose.msra.mxu0 0.0
    %261 = vmatpush.xpose.msra.mxu0 0.0
    %262 = vmatpush.xpose.msra.mxu0 0.0
    %263 = vmatpush.xpose.msra.mxu0 0.0
    %264 = vmatpush.xpose.msra.mxu0 0.0
    %265 = vmatpush.xpose.msra.mxu0 0.0
    %266 = vmatpush.xpose.msra.mxu0 0.0
    %267 = vmatpush.xpose.msra.mxu0 0.0
    %268 = vmatpush.xpose.msra.mxu0 0.0
    %269 = vmatpush.xpose.msra.mxu0 0.0
    %270 = vmatpush.xpose.msra.mxu0 0.0
    %271 = vmatpush.xpose.msra.mxu0 0.0
    %272 = vmatpush.xpose.msra.mxu0 0.0
    %273 = vmatpush.xpose.msra.mxu0 0.0
    %274 = vmatpush.xpose.msra.mxu0 %v258
    %275 = vmatpush.xpose.msra.mxu0 %v256
    %276 = vmatmul.f32.gmra.mxu0 %v245
    %v277 = vpop.f32.mrf.mxu0
    %v278 = vadd.f32 %v234, %v277
    %279 = vmatmul.f32.gmra.mxu0 %v248
    %v280 = vpop.f32.mrf.mxu0
    %v281 = vadd.f32 %v235, %v280
    %282 = vmatmul.f32.gmra.mxu0 %v251
    %v283 = vpop.f32.mrf.mxu0
    %v284 = vadd.f32 %v236, %v283
    %285 = vmatmul.f32.gmra.mxu0 %v254
    %v286 = vpop.f32.mrf.mxu0
    %v287 = vadd.f32 %v237, %v286
    %288 = vdwg.mxu0
    %vm289 = vcmask 130048
    %v290 = vsel %vm289, %v278, -inf
    %291 = vmax.xlane.f32.xlu0 %v290
    %v292 = vpop.xlane.xlu0 %291
    %v293 = vsel %vm289, %v281, -inf
    %294 = vmax.xlane.f32.xlu0 %v293
    %v295 = vpop.xlane.xlu0 %294
    %v296 = vsel %vm289, %v284, -inf
    %297 = vmax.xlane.f32.xlu0 %v296
    %v298 = vpop.xlane.xlu0 %297
    %v299 = vsel %vm289, %v287, -inf
    %300 = vmax.xlane.f32.xlu0 %v299
    %v301 = vpop.xlane.xlu0 %300
    %v302 = vsub.f32 %v278, %v292
    %v303 = vsub.f32 %v281, %v295
    %v304 = vsub.f32 %v284, %v298
    %v305 = vsub.f32 %v287, %v301
    %v306 = vmul.f32 %v302, 1.442695
    %v307 = vpow.pop %v306
    %v308 = vmul.f32 %v303, 1.442695
    %v309 = vpow.pop %v308
    %v310 = vmul.f32 %v304, 1.442695
    %v311 = vpow.pop %v310
    %v312 = vmul.f32 %v305, 1.442695
    %v313 = vpow.pop %v312
    %v314 = vsel %vm289, %v307, 0.0
    %315 = vadd.xlane.f32.xlu0 %v314
    %v316 = vpop.xlane.xlu0 %315
    %v317 = vsel %vm289, %v309, 0.0
    %318 = vadd.xlane.f32.xlu0 %v317
    %v319 = vpop.xlane.xlu0 %318
    %v320 = vsel %vm289, %v311, 0.0
    %321 = vadd.xlane.f32.xlu0 %v320
    %v322 = vpop.xlane.xlu0 %321
    %v323 = vsel %vm289, %v313, 0.0
    %324 = vadd.xlane.f32.xlu0 %v323
    %v325 = vpop.xlane.xlu0 %324
    %v326 = vrcp.pop %v316
    %v327 = vrcp.pop %v319
    %v328 = vrcp.pop %v322
    %v329 = vrcp.pop %v325
    %v330 = vmul.f32 %v307, %v326
    %v331 = vmul.f32 %v309, %v327
    %v332 = vmul.f32 %v311, %v328
    %v333 = vmul.f32 %v313, %v329
    %334 = vrot.lane.b32.xlu0 %v215, 64
    %v335 = vpop.permute.xlu0 %334
    %336 = vrot.lane.b32.xlu0 %v218, 64
    %v337 = vpop.permute.xlu0 %336
    %v341 = vsel %vm289, %v330, 0
    %v344 = vsel %vm289, %v331, 0
    %v347 = vsel %vm289, %v332, 0
    %v350 = vsel %vm289, %v333, 0
    %352 = vmatpush.msra.mxu0 0.0
    %353 = vmatpush.msra.mxu0 0.0
    %354 = vmatpush.msra.mxu0 0.0
    %355 = vmatpush.msra.mxu0 0.0
    %356 = vmatpush.msra.mxu0 0.0
    %357 = vmatpush.msra.mxu0 0.0
    %358 = vmatpush.msra.mxu0 0.0
    %359 = vmatpush.msra.mxu0 0.0
    %360 = vmatpush.msra.mxu0 0.0
    %361 = vmatpush.msra.mxu0 0.0
    %362 = vmatpush.msra.mxu0 0.0
    %363 = vmatpush.msra.mxu0 0.0
    %364 = vmatpush.msra.mxu0 0.0
    %365 = vmatpush.msra.mxu0 0.0
    %366 = vmatpush.msra.mxu0 %v337
    %367 = vmatpush.msra.mxu0 %v335
    %368 = vmatmul.f32.gmra.mxu0 %v341
    %v369 = vpop.f32.mrf.mxu0
    %v370 = vadd.f32 0.0, %v369
    %371 = vmatmul.f32.gmra.mxu0 %v344
    %v372 = vpop.f32.mrf.mxu0
    %v373 = vadd.f32 0.0, %v372
    %374 = vmatmul.f32.gmra.mxu0 %v347
    %v375 = vpop.f32.mrf.mxu0
    %v376 = vadd.f32 0.0, %v375
    %377 = vmatmul.f32.gmra.mxu0 %v350
    %v378 = vpop.f32.mrf.mxu0
    %v379 = vadd.f32 0.0, %v378
    %380 = vdwg.mxu0
    %v381 = vmul.f32 %v224, %v370
    %v382 = vmul.f32 %v224, %v373
    %v383 = vmul.f32 %v229, %v376
    %v384 = vmul.f32 %v229, %v379
    %v385 = vadd.f32 %v381, %v383
    %v386 = vadd.f32 %v382, %v384
    %v387 = vld [vmem:[#allocation2 + $0x78] sm:$0xff]
    %v388 = vld [vmem:[#allocation2 + $0x80] sm:$0xff]
    %v389 = vld [vmem:[#allocation2 + $0x88] sm:$0xff]
    %v390 = vld [vmem:[#allocation2 + $0x90] sm:$0xff]
    %v391 = vperm.slane %v32, 7
    %v393 = vsel %vm128, %v385, 0
    %v396 = vsel %vm128, %v386, 0
    %398 = vmatpush.msra.mxu0 0.0
    %399 = vmatpush.msra.mxu0 0.0
    %400 = vmatpush.msra.mxu0 0.0
    %401 = vmatpush.msra.mxu0 0.0
    %402 = vmatpush.msra.mxu0 0.0
    %403 = vmatpush.msra.mxu0 0.0
    %404 = vmatpush.msra.mxu0 0.0
    %405 = vmatpush.msra.mxu0 0.0
    %406 = vmatpush.msra.mxu0 0.0
    %407 = vmatpush.msra.mxu0 0.0
    %408 = vmatpush.msra.mxu0 0.0
    %409 = vmatpush.msra.mxu0 0.0
    %410 = vmatpush.msra.mxu0 %v390
    %411 = vmatpush.msra.mxu0 %v389
    %412 = vmatpush.msra.mxu0 %v388
    %413 = vmatpush.msra.mxu0 %v387
    %414 = vmatmul.f32.gmra.mxu0 %v393
    %v415 = vpop.f32.mrf.mxu0
    %v416 = vadd.f32 %v391, %v415
    %417 = vmatmul.f32.gmra.mxu0 %v396
    %v418 = vpop.f32.mrf.mxu0
    %v419 = vadd.f32 %v391, %v418
    %420 = vdwg.mxu0
    %v421 = vadd.f32 %v184, %v416
    %v422 = vadd.f32 %v185, %v419
    %v423 = vsel %vm128, %v421, 0.0
    %424 = vadd.xlane.f32.xlu0 %v423
    %v425 = vpop.xlane.xlu0 %424
    %v426 = vsel %vm128, %v422, 0.0
    %427 = vadd.xlane.f32.xlu0 %v426
    %v428 = vpop.xlane.xlu0 %427
    %v429 = vmul.f32 %v425, %v141
    %v430 = vmul.f32 %v428, %v141
    %v431 = vsub.f32 %v421, %v429
    %v432 = vsub.f32 %v422, %v430
    %v433 = vmul.f32 %v431, %v431
    %v434 = vmul.f32 %v432, %v432
    %v435 = vsel %vm128, %v433, 0.0
    %436 = vadd.xlane.f32.xlu0 %v435
    %v437 = vpop.xlane.xlu0 %436
    %v438 = vsel %vm128, %v434, 0.0
    %439 = vadd.xlane.f32.xlu0 %v438
    %v440 = vpop.xlane.xlu0 %439
    %v441 = vmul.f32 %v437, %v141
    %v442 = vmul.f32 %v440, %v141
    %v443 = vadd.f32 %v441, 1e-12
    %v444 = vadd.f32 %v442, 1e-12
    %v445 = vrsqrt.pop %v443
    %v446 = vmul.f32 %v445, %v443
    %v447 = vmul.f32 %v446, %v445
    %v448 = vmul.f32 0.5, %v447
    %v449 = vsub.f32 1.5, %v448
    %v450 = vmul.f32 %v445, %v449
    %vm451 = vweird.f32 %v443
    %vm452 = vweird.f32 %v445
    %vm453 = vmor %vm451, %vm452
    %v454 = vsel %vm453, %v445, %v450
    %v455 = vrsqrt.pop %v444
    %v456 = vmul.f32 %v455, %v444
    %v457 = vmul.f32 %v456, %v455
    %v458 = vmul.f32 0.5, %v457
    %v459 = vsub.f32 1.5, %v458
    %v460 = vmul.f32 %v455, %v459
    %vm461 = vweird.f32 %v444
    %vm462 = vweird.f32 %v455
    %vm463 = vmor %vm461, %vm462
    %v464 = vsel %vm463, %v455, %v460
    %v465 = vmul.f32 %v431, %v454
    %v466 = vmul.f32 %v432, %v464
    %v467 = vperm.slane %v32, 2
    %v468 = vmul.f32 %v465, %v467
    %v469 = vmul.f32 %v466, %v467
    %v470 = vperm.slane %v32, 3
    %v471 = vadd.f32 %v468, %v470
    %v472 = vadd.f32 %v469, %v470
    %v473 = vld [vmem:[#allocation2 + $0x98] sm:$0xff]
    %v474 = vld [vmem:[#allocation2 + $0xa0] sm:$0xff]
    %v475 = vld [vmem:[#allocation2 + $0xa8] sm:$0xff]
    %v476 = vld [vmem:[#allocation2 + $0xb0] sm:$0xff]
    %v477 = vperm.slane %v33, 0
    %v479 = vsel %vm128, %v471, 0
    %v482 = vsel %vm128, %v472, 0
    %484 = vmatpush.msra.mxu0 0.0
    %485 = vmatpush.msra.mxu0 0.0
    %486 = vmatpush.msra.mxu0 0.0
    %487 = vmatpush.msra.mxu0 0.0
    %488 = vmatpush.msra.mxu0 0.0
    %489 = vmatpush.msra.mxu0 0.0
    %490 = vmatpush.msra.mxu0 0.0
    %491 = vmatpush.msra.mxu0 0.0
    %492 = vmatpush.msra.mxu0 0.0
    %493 = vmatpush.msra.mxu0 0.0
    %494 = vmatpush.msra.mxu0 0.0
    %495 = vmatpush.msra.mxu0 0.0
    %496 = vmatpush.msra.mxu0 %v476
    %497 = vmatpush.msra.mxu0 %v475
    %498 = vmatpush.msra.mxu0 %v474
    %499 = vmatpush.msra.mxu0 %v473
    %500 = vmatmul.f32.gmra.mxu0 %v479
    %v501 = vpop.f32.mrf.mxu0
    %v502 = vadd.f32 %v477, %v501
    %503 = vmatmul.f32.gmra.mxu0 %v482
    %v504 = vpop.f32.mrf.mxu0
    %v505 = vadd.f32 %v477, %v504
    %506 = vdwg.mxu0
    %v507 = vmul.f32 %v502, %v502
    %v508 = vmul.f32 %v505, %v505
    %v509 = vmul.f32 %v502, %v507
    %v510 = vmul.f32 %v505, %v508
    %v511 = vmul.f32 %v509, 0.044715
    %v512 = vmul.f32 %v510, 0.044715
    %v513 = vadd.f32 %v502, %v511
    %v514 = vadd.f32 %v505, %v512
    %v515 = vmul.f32 %v513, 0.7978846
    %v516 = vmul.f32 %v514, 0.7978846
    %v517 = vtanh.pop %v515
    %v518 = vtanh.pop %v516
    %v519 = vadd.f32 %v517, 1.0
    %v520 = vadd.f32 %v518, 1.0
    %v521 = vmul.f32 %v519, 0.5
    %v522 = vmul.f32 %v520, 0.5
    %v523 = vmul.f32 %v502, %v521
    %v524 = vmul.f32 %v505, %v522
    %v525 = vld [vmem:[#allocation2 + $0xb8] sm:$0xff]
    %v526 = vld [vmem:[#allocation2 + $0xc0] sm:$0xff]
    %v527 = vld [vmem:[#allocation2 + $0xc8] sm:$0xff]
    %v528 = vld [vmem:[#allocation2 + $0xd0] sm:$0xff]
    %v529 = vld [vmem:[#allocation2 + $0xd8] sm:$0xff]
    %v530 = vld [vmem:[#allocation2 + $0xe0] sm:$0xff]
    %v531 = vld [vmem:[#allocation2 + $0xe8] sm:$0xff]
    %v532 = vld [vmem:[#allocation2 + $0xf0] sm:$0xff]
    %v533 = vperm.slane %v33, 1
    %v535 = vsel %vm58, %v523, 0
    %v538 = vsel %vm58, %v524, 0
    %540 = vmatpush.msra.mxu0 0.0
    %541 = vmatpush.msra.mxu0 0.0
    %542 = vmatpush.msra.mxu0 0.0
    %543 = vmatpush.msra.mxu0 0.0
    %544 = vmatpush.msra.mxu0 0.0
    %545 = vmatpush.msra.mxu0 0.0
    %546 = vmatpush.msra.mxu0 0.0
    %547 = vmatpush.msra.mxu0 0.0
    %548 = vmatpush.msra.mxu0 %v532
    %549 = vmatpush.msra.mxu0 %v531
    %550 = vmatpush.msra.mxu0 %v530
    %551 = vmatpush.msra.mxu0 %v529
    %552 = vmatpush.msra.mxu0 %v528
    %553 = vmatpush.msra.mxu0 %v527
    %554 = vmatpush.msra.mxu0 %v526
    %555 = vmatpush.msra.mxu0 %v525
    %556 = vmatmul.f32.gmra.mxu0 %v535
    %v557 = vpop.f32.mrf.mxu0
    %v558 = vadd.f32 %v533, %v557
    %559 = vmatmul.f32.gmra.mxu0 %v538
    %v560 = vpop.f32.mrf.mxu0
    %v561 = vadd.f32 %v533, %v560
    %562 = vdwg.mxu0
    %v563 = vadd.f32 %v471, %v558
    %v564 = vadd.f32 %v472, %v561
    %v565 = vsel %vm128, %v563, 0.0
    %566 = vadd.xlane.f32.xlu0 %v565
    %v567 = vpop.xlane.xlu0 %566
    %v568 = vsel %vm128, %v564, 0.0
    %569 = vadd.xlane.f32.xlu0 %v568
    %v570 = vpop.xlane.xlu0 %569
    %v571 = vmul.f32 %v567, %v141
    %v572 = vmul.f32 %v570, %v141
    %v573 = vsub.f32 %v563, %v571
    %v574 = vsub.f32 %v564, %v572
    %v575 = vmul.f32 %v573, %v573
    %v576 = vmul.f32 %v574, %v574
    %v577 = vsel %vm128, %v575, 0.0
    %578 = vadd.xlane.f32.xlu0 %v577
    %v579 = vpop.xlane.xlu0 %578
    %v580 = vsel %vm128, %v576, 0.0
    %581 = vadd.xlane.f32.xlu0 %v580
    %v582 = vpop.xlane.xlu0 %581
    %v583 = vmul.f32 %v579, %v141
    %v584 = vmul.f32 %v582, %v141
    %v585 = vadd.f32 %v583, 1e-12
    %v586 = vadd.f32 %v584, 1e-12
    %v587 = vrsqrt.pop %v585
    %v588 = vmul.f32 %v587, %v585
    %v589 = vmul.f32 %v588, %v587
    %v590 = vmul.f32 0.5, %v589
    %v591 = vsub.f32 1.5, %v590
    %v592 = vmul.f32 %v587, %v591
    %vm593 = vweird.f32 %v585
    %vm594 = vweird.f32 %v587
    %vm595 = vmor %vm593, %vm594
    %v596 = vsel %vm595, %v587, %v592
    %v597 = vrsqrt.pop %v586
    %v598 = vmul.f32 %v597, %v586
    %v599 = vmul.f32 %v598, %v597
    %v600 = vmul.f32 0.5, %v599
    %v601 = vsub.f32 1.5, %v600
    %v602 = vmul.f32 %v597, %v601
    %vm603 = vweird.f32 %v586
    %vm604 = vweird.f32 %v597
    %vm605 = vmor %vm603, %vm604
    %v606 = vsel %vm605, %v597, %v602
    %v607 = vmul.f32 %v573, %v596
    %v608 = vmul.f32 %v574, %v606
    %v609 = vperm.slane %v32, 4
    %v610 = vmul.f32 %v607, %v609
    %v611 = vmul.f32 %v608, %v609
    %v612 = vperm.slane %v32, 5
    %v613 = vadd.f32 %v610, %v612
    %v614 = vadd.f32 %v611, %v612
    %v615 = vld [vmem:[#allocation2 + $0xf8] sm:$0xff]
    %v616 = vld [vmem:[#allocation2 + $0x100] sm:$0xff]
    %v617 = vld [vmem:[#allocation2 + $0x108] sm:$0xff]
    %v618 = vld [vmem:[#allocation2 + $0x110] sm:$0xff]
    %v619 = vperm.slane %v33, 2
    %v621 = vsel %vm128, %v613, 0
    %v624 = vsel %vm128, %v614, 0
    %626 = vmatpush.msra.mxu0 0.0
    %627 = vmatpush.msra.mxu0 0.0
    %628 = vmatpush.msra.mxu0 0.0
    %629 = vmatpush.msra.mxu0 0.0
    %630 = vmatpush.msra.mxu0 0.0
    %631 = vmatpush.msra.mxu0 0.0
    %632 = vmatpush.msra.mxu0 0.0
    %633 = vmatpush.msra.mxu0 0.0
    %634 = vmatpush.msra.mxu0 0.0
    %635 = vmatpush.msra.mxu0 0.0
    %636 = vmatpush.msra.mxu0 0.0
    %637 = vmatpush.msra.mxu0 0.0
    %638 = vmatpush.msra.mxu0 %v618
    %639 = vmatpush.msra.mxu0 %v617
    %640 = vmatpush.msra.mxu0 %v616
    %641 = vmatpush.msra.mxu0 %v615
    %642 = vmatmul.f32.gmra.mxu0 %v621
    %v643 = vpop.f32.mrf.mxu0
    %v644 = vadd.f32 %v619, %v643
    %645 = vmatmul.f32.gmra.mxu0 %v624
    %v646 = vpop.f32.mrf.mxu0
    %v647 = vadd.f32 %v619, %v646
    %648 = vdwg.mxu0
    %649 = vst [vmem:[%s3] sm:$0xff] %v644
    %650 = vst [vmem:[%s3 + $0x8] sm:$0xff] %v647
    // Predicated region
    $region18: #{transformer_tag_forward.1} parent=1 // pred_check
      _
    $region19: #{transformer_tag_forward.1} parent=1 // pred_check_branch
      %652 = sbr.rel (0) target = $region21
    $region20: #{transformer_tag_forward.1} parent=1 // pred_region
      _
    $region21: #{transformer_tag_forward.1} parent=1 // pred_fallthru
      _
    // Predicated region
    $region22: #{transformer_tag_forward.1} parent=1 // pred_check
      _
    $region23: #{transformer_tag_forward.1} parent=1 // pred_check_branch
      %654 = sbr.rel (0) target = $region25
    $region24: #{transformer_tag_forward.1} parent=1 // pred_region
      _
    $region25: #{transformer_tag_forward.1} parent=1 // pred_fallthru
      _
    %655 = vsyncpa [#allocation3], 1

</llo_original>
